<compile_context>
chip_gen: v7x
topology: tpu7x:2x2x1
jax: 0.10.0
libtpu: 0.0.40
codegen_flags: <defaults>
</compile_context>

<pallas_src>
import functools

import jax
import jax.numpy as jnp
from jax.experimental import pallas as pl
from jax.experimental.pallas import tpu as pltpu

_LANE = 128
_SUBLANE = 8


def _round_up(x, m):
    return ((x + m - 1) // m) * m


def _pad2(a, rows, cols):
    r, c = a.shape
    return jnp.pad(a, ((0, rows - r), (0, cols - c)))


# -----------------------------------------------------------------------------
# Kernel
# -----------------------------------------------------------------------------
def _vae_kernel(
    # per-tile inputs (true, unpadded lane widths)
    x_ref, eps_ref,
    # resident weights (pre-cast, pre-padded) / biases (f32)
    we1_ref, be1_ref, we2_ref, be2_ref,
    whead_ref, bhead_ref,
    wd1_ref, bd1_ref, wd2_ref, bd2_ref,
    wdo_ref, bdo_ref,
    # per-tile outputs (lane-dense)
    out_ref, lat_ref,
    *, latent_dim, lat_pad,
):
    f32 = jnp.float32

    def mm(a, w_ref):
        w = w_ref[...]                      # already in matmul dtype (bf16/f32)
        return jnp.dot(a.astype(w.dtype), w, preferred_element_type=f32)

    x = x_ref[...]

    # ----- encoder: Linear -> ReLU -> Linear -> ReLU (f32 elementwise) -----
    h = jnp.maximum(mm(x, we1_ref) + be1_ref[...], 0.0)
    h = jnp.maximum(mm(h, we2_ref) + be2_ref[...], 0.0)

    # ----- fused mu/logvar head: single [h2p, round_up(2*latent,128)] matmul --
    head = mm(h, whead_ref) + bhead_ref[...]
    mu = head[:, :latent_dim]
    logvar = head[:, latent_dim:2 * latent_dim]

    # ----- reparametrize: z = mu + exp(0.5 * logvar) * eps (f32) -----
    std = jnp.exp(0.5 * logvar)
    z = mu + std * eps_ref[...]

    # ----- decoder: Linear -> ReLU -> Linear -> ReLU -> Linear -> Sigmoid ----
    d = jnp.maximum(mm(z, wd1_ref) + bd1_ref[...], 0.0)
    d = jnp.maximum(mm(d, wd2_ref) + bd2_ref[...], 0.0)
    out_ref[...] = jax.nn.sigmoid(mm(d, wdo_ref) + bdo_ref[...])

    # Lane-dense packed latent writeback: [z | mu | logvar | 0-pad] in one slab.
    parts = [z, mu, logvar]
    pad = lat_pad - 3 * latent_dim
    if pad:
        parts.append(jnp.zeros((z.shape[0], pad), f32))
    lat_ref[...] = jnp.concatenate(parts, axis=-1)


# -----------------------------------------------------------------------------
# One-time weight packing (call OUTSIDE the per-forward / jitted hot path)
# -----------------------------------------------------------------------------
def pack_params(params, input_dim, latent_dim,
                matmul_dtype=jnp.bfloat16, head_dtype=None):
    """Pad feature dims to 128-lane multiples where they feed lane-dense
    outputs, fuse mu/logvar heads, and pre-cast matmul weights (default bf16).

    Set head_dtype=jnp.float32 to keep the mu/logvar head matmul in f32 if
    latent precision matters downstream (it is a small fraction of FLOPs)."""
    if head_dtype is None:
        head_dtype = matmul_dtype
    h1 = params["we1"].shape[1]
    h2 = params["we2"].shape[1]
    h1p = _round_up(h1, _LANE)
    h2p = _round_up(h2, _LANE)
    hw = _round_up(2 * latent_dim, _LANE)          # fused mu|logvar head width
    dp = _round_up(input_dim, _LANE)               # decoder output lane width
    lat_pad = _round_up(3 * latent_dim, _LANE)     # packed z|mu|logvar width

    def w(a, rows, cols, dt):
        return _pad2(a, rows, cols).astype(dt)

    def b(a, cols):
        return _pad2(a, 1, cols).astype(jnp.float32)

    packed = dict(
        # K dims left at their true sizes (input_dim / latent_dim rows).
        we1=w(params["we1"], input_dim, h1p, matmul_dtype), be1=b(params["be1"], h1p),
        we2=w(params["we2"], h1p, h2p, matmul_dtype),       be2=b(params["be2"], h2p),
        whead=w(jnp.concatenate([params["wmu"], params["wlv"]], axis=1),
                h2p, hw, head_dtype),
        bhead=b(jnp.concatenate([params["bmu"], params["blv"]], axis=1), hw),
        wd1=w(params["wd1"], latent_dim, h2p, matmul_dtype), bd1=b(params["bd1"], h2p),
        wd2=w(params["wd2"], h2p, h1p, matmul_dtype),        bd2=b(params["bd2"], h1p),
        wdo=w(params["wdo"], h1p, dp, matmul_dtype),         bdo=b(params["bdo"], dp),
    )
    meta = dict(input_dim=input_dim, latent_dim=latent_dim,
                h1p=h1p, h2p=h2p, hw=hw, dp=dp, lat_pad=lat_pad)
    return packed, meta


# -----------------------------------------------------------------------------
# Batch-tile policy: multiple of 8, exact divisor of padded B where possible,
# capped, and preferring >= 2 grid steps (v7x second core / pipelining).
# -----------------------------------------------------------------------------
def _choose_batch_tile(b, cap=512):
    bp = _round_up(b, _SUBLANE)
    candidates = [d for d in range(_SUBLANE, min(cap, bp) + 1, _SUBLANE)
                  if bp % d == 0]
    two_step = [d for d in candidates if bp // d >= 2]
    tb = max(two_step) if two_step else max(candidates)
    # Ragged-B fallback: if divisibility forces tiny tiles, pad a little and
    # use a big tile instead (waste < one tile, amortizes per-step overhead).
    if tb < min(cap, 128) and bp > 128:
        tb = min(cap, 256)
        bp = _round_up(bp, tb)
    return tb, bp


# -----------------------------------------------------------------------------
# Forward
# -----------------------------------------------------------------------------
def vae_forward(x, eps, packed, meta, *, tb_cap=512):
    """Full VAE forward pass as one batch-gridded Pallas kernel.

    `packed, meta = pack_params(...)` must be produced once, outside the
    per-call hot path."""
    B, input_dim = x.shape
    latent_dim = meta["latent_dim"]
    dp, hw, lat_pad = meta["dp"], meta["hw"], meta["lat_pad"]
    h1p, h2p = meta["h1p"], meta["h2p"]

    tb, bp = _choose_batch_tile(B, tb_cap)
    pad_rows = bp - B

    xp = x.astype(jnp.float32)
    epsp = eps.astype(jnp.float32)
    if pad_rows:
        xp = jnp.pad(xp, ((0, pad_rows), (0, 0)))
        epsp = jnp.pad(epsp, ((0, pad_rows), (0, 0)))

    grid = (bp // tb,)

    def row_spec(cols):
        return pl.BlockSpec((tb, cols), lambda i: (i, 0))

    def w_spec(arr):
        # Constant index_map -> weight stays resident in VMEM across the grid.
        return pl.BlockSpec(arr.shape, lambda i: (0, 0))

    weight_order = ("we1", "be1", "we2", "be2", "whead", "bhead",
                    "wd1", "bd1", "wd2", "bd2", "wdo", "bdo")
    weight_inputs = [packed[k] for k in weight_order]

    in_specs = ([row_spec(input_dim), row_spec(latent_dim)]
                + [w_spec(w) for w in weight_inputs])
    out_specs = (row_spec(dp), row_spec(lat_pad))
    out_shapes = (
        jax.ShapeDtypeStruct((bp, dp), jnp.float32),        # decoder output
        jax.ShapeDtypeStruct((bp, lat_pad), jnp.float32),   # packed z|mu|logvar
    )

    # Advisory cost hint for the XLA scheduler.
    flops = 2 * bp * (input_dim * h1p + h1p * h2p + h2p * hw
                      + latent_dim * h2p + h2p * h1p + h1p * dp)
    transcendentals = bp * (latent_dim + dp)               # exp + sigmoid
    bytes_accessed = (sum(int(w.size) * w.dtype.itemsize for w in weight_inputs)
                      + 4 * (bp * input_dim + bp * latent_dim
                             + bp * dp + bp * lat_pad))

    fn = pl.pallas_call(
        functools.partial(_vae_kernel, latent_dim=latent_dim, lat_pad=lat_pad),
        out_shape=out_shapes,
        grid=grid,
        in_specs=in_specs,
        out_specs=out_specs,
        compiler_params=pltpu.CompilerParams(
            dimension_semantics=("parallel",)),
        cost_estimate=pl.CostEstimate(
            flops=flops,
            transcendentals=transcendentals,
            bytes_accessed=bytes_accessed),
    )
    out_p, lat_p = fn(xp, epsp, *weight_inputs)

    out = out_p[:B, :input_dim]
    z = lat_p[:B, 0 * latent_dim:1 * latent_dim]
    mu = lat_p[:B, 1 * latent_dim:2 * latent_dim]
    logvar = lat_p[:B, 2 * latent_dim:3 * latent_dim]
    return out, z, mu, logvar


# -----------------------------------------------------------------------------
# Parameters (logical, unpadded; matches nn.Linear shapes stored as [in, out])
# -----------------------------------------------------------------------------
def init_params(key, input_dim, layer_sizes, latent_dim):
    h1, h2 = layer_sizes
    dims = {
        "we1": (input_dim, h1), "be1": (1, h1),
        "we2": (h1, h2),        "be2": (1, h2),
        "wmu": (h2, latent_dim), "bmu": (1, latent_dim),
        "wlv": (h2, latent_dim), "blv": (1, latent_dim),
        # decoder uses flipped layer sizes: latent -> h2 -> h1 -> input
        "wd1": (latent_dim, h2), "bd1": (1, h2),
        "wd2": (h2, h1),         "bd2": (1, h1),
        "wdo": (h1, input_dim),  "bdo": (1, input_dim),
    }
    params = {}
    for name, shape in dims.items():
        key, sub = jax.random.split(key)
        fan_in = shape[0] if name.startswith("w") else shape[1]
        scale = 1.0 / jnp.sqrt(jnp.float32(fan_in))
        params[name] = scale * jax.random.normal(sub, shape, dtype=jnp.float32)
    return params


if __name__ == "__main__":
    # Small shapes consistent with a trajectory-modality VAE.
    B = 8
    INPUT_DIM = 32
    LAYER_SIZES = (128, 64)   # setup['linear_layer_sizes']
    LATENT_DIM = 16

    root = jax.random.PRNGKey(0)
    k_x, k_eps, k_p = jax.random.split(root, 3)

    x = jax.random.uniform(k_x, (B, INPUT_DIM), dtype=jnp.float32)
    eps = jax.random.normal(k_eps, (B, LATENT_DIM), dtype=jnp.float32)
    params = init_params(k_p, INPUT_DIM, LAYER_SIZES, LATENT_DIM)

    # Pure-JAX reference for correctness sanity checks.
    def ref(x, eps, p):
        h = jax.nn.relu(x @ p["we1"] + p["be1"])
        h = jax.nn.relu(h @ p["we2"] + p["be2"])
        mu = h @ p["wmu"] + p["bmu"]
        lv = h @ p["wlv"] + p["blv"]
        z = mu + jnp.exp(0.5 * lv) * eps
        d = jax.nn.relu(z @ p["wd1"] + p["bd1"])
        d = jax.nn.relu(d @ p["wd2"] + p["bd2"])
        o = jax.nn.sigmoid(d @ p["wdo"] + p["bdo"])
        return o, z, mu, lv

    r_out, r_z, r_mu, r_lv = ref(x, eps, params)

    # --- f32 matmul path (tight tolerance) ---
    packed_f32, meta = pack_params(params, INPUT_DIM, LATENT_DIM,
                                   matmul_dtype=jnp.float32)
    fwd_f32 = jax.jit(functools.partial(vae_forward, meta=meta))
    out, z, mu, logvar = jax.block_until_ready(fwd_f32(x, eps, packed_f32))
    assert jnp.allclose(out, r_out, atol=1e-5, rtol=1e-5)
    assert jnp.allclose(z, r_z, atol=1e-5, rtol=1e-5)
    assert jnp.allclose(mu, r_mu, atol=1e-5, rtol=1e-5)
    assert jnp.allclose(logvar, r_lv, atol=1e-5, rtol=1e-5)

    # --- bf16 matmul path (default; loose tolerance) ---
    packed_bf16, meta_b = pack_params(params, INPUT_DIM, LATENT_DIM)
    fwd_bf16 = jax.jit(functools.partial(vae_forward, meta=meta_b))
    out_b, z_b, mu_b, lv_b = jax.block_until_ready(fwd_bf16(x, eps, packed_bf16))
    assert jnp.allclose(out_b, r_out, atol=3e-2, rtol=3e-2)
    assert jnp.allclose(z_b, r_z, atol=3e-2, rtol=3e-2)
    assert jnp.allclose(mu_b, r_mu, atol=3e-2, rtol=3e-2)
    assert jnp.allclose(lv_b, r_lv, atol=3e-2, rtol=3e-2)

    print("KERNEL_OK")
</pallas_src>

<mosaic_0001>
module attributes {stable_mosaic.version = 11 : i64} {
  func.func @_vae_kernel(%arg0: i32, %arg1: memref<8x32xf32, #tpu.memory_space<vmem>>, %arg2: memref<8x16xf32, #tpu.memory_space<vmem>>, %arg3: memref<32x128xf32, #tpu.memory_space<vmem>>, %arg4: memref<1x128xf32, #tpu.memory_space<vmem>>, %arg5: memref<128x128xf32, #tpu.memory_space<vmem>>, %arg6: memref<1x128xf32, #tpu.memory_space<vmem>>, %arg7: memref<128x128xf32, #tpu.memory_space<vmem>>, %arg8: memref<1x128xf32, #tpu.memory_space<vmem>>, %arg9: memref<16x128xf32, #tpu.memory_space<vmem>>, %arg10: memref<1x128xf32, #tpu.memory_space<vmem>>, %arg11: memref<128x128xf32, #tpu.memory_space<vmem>>, %arg12: memref<1x128xf32, #tpu.memory_space<vmem>>, %arg13: memref<128x128xf32, #tpu.memory_space<vmem>>, %arg14: memref<1x128xf32, #tpu.memory_space<vmem>>, %arg15: memref<8x128xf32, #tpu.memory_space<vmem>>, %arg16: memref<8x128xf32, #tpu.memory_space<vmem>>) attributes {dimension_semantics = [#tpu.dimension_semantics<parallel>], iteration_bounds = array<i64: 1>, scalar_prefetch = 0 : i64, scratch_operands = 0 : i64, tpu.core_type = #tpu.core_type<tc>, window_params = [{transform_indices = @transform_0, window_bounds = array<i64: 8, 32>}, {transform_indices = @transform_1, window_bounds = array<i64: 8, 16>}, {pipeline_mode = #tpu.pipeline_mode<synchronous>, transform_indices = @transform_2, window_bounds = array<i64: 32, 128>}, {pipeline_mode = #tpu.pipeline_mode<synchronous>, transform_indices = @transform_3, window_bounds = array<i64: 1, 128>}, {pipeline_mode = #tpu.pipeline_mode<synchronous>, transform_indices = @transform_4, window_bounds = array<i64: 128, 128>}, {pipeline_mode = #tpu.pipeline_mode<synchronous>, transform_indices = @transform_5, window_bounds = array<i64: 1, 128>}, {pipeline_mode = #tpu.pipeline_mode<synchronous>, transform_indices = @transform_6, window_bounds = array<i64: 128, 128>}, {pipeline_mode = #tpu.pipeline_mode<synchronous>, transform_indices = @transform_7, window_bounds = array<i64: 1, 128>}, {pipeline_mode = #tpu.pipeline_mode<synchronous>, transform_indices = @transform_8, window_bounds = array<i64: 16, 128>}, {pipeline_mode = #tpu.pipeline_mode<synchronous>, transform_indices = @transform_9, window_bounds = array<i64: 1, 128>}, {pipeline_mode = #tpu.pipeline_mode<synchronous>, transform_indices = @transform_10, window_bounds = array<i64: 128, 128>}, {pipeline_mode = #tpu.pipeline_mode<synchronous>, transform_indices = @transform_11, window_bounds = array<i64: 1, 128>}, {pipeline_mode = #tpu.pipeline_mode<synchronous>, transform_indices = @transform_12, window_bounds = array<i64: 128, 128>}, {pipeline_mode = #tpu.pipeline_mode<synchronous>, transform_indices = @transform_13, window_bounds = array<i64: 1, 128>}, {transform_indices = @transform_14, window_bounds = array<i64: 8, 128>}, {transform_indices = @transform_15, window_bounds = array<i64: 8, 128>}]} {
    %c0 = arith.constant 0 : index
    %c0_0 = arith.constant 0 : index
    %0 = vector.load %arg1[%c0, %c0_0] : memref<8x32xf32, #tpu.memory_space<vmem>>, vector<8x32xf32>
    %c0_1 = arith.constant 0 : index
    %c0_2 = arith.constant 0 : index
    %1 = vector.load %arg3[%c0_1, %c0_2] : memref<32x128xf32, #tpu.memory_space<vmem>>, vector<32x128xf32>
    %cst = arith.constant dense<0.000000e+00> : vector<8x128xf32>
    %2 = tpu.matmul %0, %1, %cst {dimension_numbers = #tpu.dot_dimension_numbers<[1], [0], [0], [1], [0, 0, 1, 1], [], []>} : vector<8x32xf32>, vector<32x128xf32>, vector<8x128xf32> -> vector<8x128xf32>
    %c0_3 = arith.constant 0 : index
    %c0_4 = arith.constant 0 : index
    %3 = vector.load %arg4[%c0_3, %c0_4] : memref<1x128xf32, #tpu.memory_space<vmem>>, vector<1x128xf32>
    %4 = vector.broadcast %3 : vector<1x128xf32> to vector<8x128xf32>
    %5 = arith.addf %2, %4 : vector<8x128xf32>
    %cst_5 = arith.constant 0.000000e+00 : f32
    %6 = vector.broadcast %cst_5 : f32 to vector<8x128xf32>
    %7 = arith.maximumf %5, %6 : vector<8x128xf32>
    %c0_6 = arith.constant 0 : index
    %c0_7 = arith.constant 0 : index
    %8 = vector.load %arg5[%c0_6, %c0_7] : memref<128x128xf32, #tpu.memory_space<vmem>>, vector<128x128xf32>
    %cst_8 = arith.constant dense<0.000000e+00> : vector<8x128xf32>
    %9 = tpu.matmul %7, %8, %cst_8 {dimension_numbers = #tpu.dot_dimension_numbers<[1], [0], [0], [1], [0, 0, 1, 1], [], []>} : vector<8x128xf32>, vector<128x128xf32>, vector<8x128xf32> -> vector<8x128xf32>
    %c0_9 = arith.constant 0 : index
    %c0_10 = arith.constant 0 : index
    %10 = vector.load %arg6[%c0_9, %c0_10] : memref<1x128xf32, #tpu.memory_space<vmem>>, vector<1x128xf32>
    %11 = vector.broadcast %10 : vector<1x128xf32> to vector<8x128xf32>
    %12 = arith.addf %9, %11 : vector<8x128xf32>
    %cst_11 = arith.constant 0.000000e+00 : f32
    %13 = vector.broadcast %cst_11 : f32 to vector<8x128xf32>
    %14 = arith.maximumf %12, %13 : vector<8x128xf32>
    %c0_12 = arith.constant 0 : index
    %c0_13 = arith.constant 0 : index
    %15 = vector.load %arg7[%c0_12, %c0_13] : memref<128x128xf32, #tpu.memory_space<vmem>>, vector<128x128xf32>
    %cst_14 = arith.constant dense<0.000000e+00> : vector<8x128xf32>
    %16 = tpu.matmul %14, %15, %cst_14 {dimension_numbers = #tpu.dot_dimension_numbers<[1], [0], [0], [1], [0, 0, 1, 1], [], []>} : vector<8x128xf32>, vector<128x128xf32>, vector<8x128xf32> -> vector<8x128xf32>
    %c0_15 = arith.constant 0 : index
    %c0_16 = arith.constant 0 : index
    %17 = vector.load %arg8[%c0_15, %c0_16] : memref<1x128xf32, #tpu.memory_space<vmem>>, vector<1x128xf32>
    %18 = vector.broadcast %17 : vector<1x128xf32> to vector<8x128xf32>
    %19 = arith.addf %16, %18 : vector<8x128xf32>
    %20 = vector.extract_strided_slice %19 {offsets = [0, 0], sizes = [8, 16], strides = [1, 1]} : vector<8x128xf32> to vector<8x16xf32>
    %21 = vector.extract_strided_slice %19 {offsets = [0, 16], sizes = [8, 16], strides = [1, 1]} : vector<8x128xf32> to vector<8x16xf32>
    %cst_17 = arith.constant 5.000000e-01 : f32
    %22 = vector.broadcast %cst_17 : f32 to vector<8x16xf32>
    %23 = arith.mulf %22, %21 : vector<8x16xf32>
    %24 = math.exp %23 : vector<8x16xf32>
    %c0_18 = arith.constant 0 : index
    %c0_19 = arith.constant 0 : index
    %25 = vector.load %arg2[%c0_18, %c0_19] : memref<8x16xf32, #tpu.memory_space<vmem>>, vector<8x16xf32>
    %26 = arith.mulf %24, %25 : vector<8x16xf32>
    %27 = arith.addf %20, %26 : vector<8x16xf32>
    %c0_20 = arith.constant 0 : index
    %c0_21 = arith.constant 0 : index
    %28 = vector.load %arg9[%c0_20, %c0_21] : memref<16x128xf32, #tpu.memory_space<vmem>>, vector<16x128xf32>
    %cst_22 = arith.constant dense<0.000000e+00> : vector<8x128xf32>
    %29 = tpu.matmul %27, %28, %cst_22 {dimension_numbers = #tpu.dot_dimension_numbers<[1], [0], [0], [1], [0, 0, 1, 1], [], []>} : vector<8x16xf32>, vector<16x128xf32>, vector<8x128xf32> -> vector<8x128xf32>
    %c0_23 = arith.constant 0 : index
    %c0_24 = arith.constant 0 : index
    %30 = vector.load %arg10[%c0_23, %c0_24] : memref<1x128xf32, #tpu.memory_space<vmem>>, vector<1x128xf32>
    %31 = vector.broadcast %30 : vector<1x128xf32> to vector<8x128xf32>
    %32 = arith.addf %29, %31 : vector<8x128xf32>
    %cst_25 = arith.constant 0.000000e+00 : f32
    %33 = vector.broadcast %cst_25 : f32 to vector<8x128xf32>
    %34 = arith.maximumf %32, %33 : vector<8x128xf32>
    %c0_26 = arith.constant 0 : index
    %c0_27 = arith.constant 0 : index
    %35 = vector.load %arg11[%c0_26, %c0_27] : memref<128x128xf32, #tpu.memory_space<vmem>>, vector<128x128xf32>
    %cst_28 = arith.constant dense<0.000000e+00> : vector<8x128xf32>
    %36 = tpu.matmul %34, %35, %cst_28 {dimension_numbers = #tpu.dot_dimension_numbers<[1], [0], [0], [1], [0, 0, 1, 1], [], []>} : vector<8x128xf32>, vector<128x128xf32>, vector<8x128xf32> -> vector<8x128xf32>
    %c0_29 = arith.constant 0 : index
    %c0_30 = arith.constant 0 : index
    %37 = vector.load %arg12[%c0_29, %c0_30] : memref<1x128xf32, #tpu.memory_space<vmem>>, vector<1x128xf32>
    %38 = vector.broadcast %37 : vector<1x128xf32> to vector<8x128xf32>
    %39 = arith.addf %36, %38 : vector<8x128xf32>
    %cst_31 = arith.constant 0.000000e+00 : f32
    %40 = vector.broadcast %cst_31 : f32 to vector<8x128xf32>
    %41 = arith.maximumf %39, %40 : vector<8x128xf32>
    %c0_32 = arith.constant 0 : index
    %c0_33 = arith.constant 0 : index
    %42 = vector.load %arg13[%c0_32, %c0_33] : memref<128x128xf32, #tpu.memory_space<vmem>>, vector<128x128xf32>
    %cst_34 = arith.constant dense<0.000000e+00> : vector<8x128xf32>
    %43 = tpu.matmul %41, %42, %cst_34 {dimension_numbers = #tpu.dot_dimension_numbers<[1], [0], [0], [1], [0, 0, 1, 1], [], []>} : vector<8x128xf32>, vector<128x128xf32>, vector<8x128xf32> -> vector<8x128xf32>
    %c0_35 = arith.constant 0 : index
    %c0_36 = arith.constant 0 : index
    %44 = vector.load %arg14[%c0_35, %c0_36] : memref<1x128xf32, #tpu.memory_space<vmem>>, vector<1x128xf32>
    %45 = vector.broadcast %44 : vector<1x128xf32> to vector<8x128xf32>
    %46 = arith.addf %43, %45 : vector<8x128xf32>
    %47 = arith.negf %46 : vector<8x128xf32>
    %48 = math.exp %47 : vector<8x128xf32>
    %cst_37 = arith.constant 1.000000e+00 : f32
    %49 = vector.broadcast %cst_37 : f32 to vector<8x128xf32>
    %50 = arith.addf %49, %48 : vector<8x128xf32>
    %51 = arith.divf %49, %50 : vector<8x128xf32>
    %c0_38 = arith.constant 0 : index
    %c0_39 = arith.constant 0 : index
    %52 = vector.load %arg15[%c0_38, %c0_39] : memref<8x128xf32, #tpu.memory_space<vmem>>, vector<8x128xf32>
    tpu.vector_store %arg15[%c0_38, %c0_39], %51 {strides = array<i32>} : memref<8x128xf32, #tpu.memory_space<vmem>>, vector<8x128xf32>,
    %cst_40 = arith.constant 0.000000e+00 : f32
    %53 = vector.broadcast %cst_40 : f32 to vector<8x80xf32>
    %54 = tpu.concatenate %27, %20, %21, %53 in 1 : vector<8x16xf32>, vector<8x16xf32>, vector<8x16xf32>, vector<8x80xf32> -> vector<8x128xf32>
    %c0_41 = arith.constant 0 : index
    %c0_42 = arith.constant 0 : index
    %55 = vector.load %arg16[%c0_41, %c0_42] : memref<8x128xf32, #tpu.memory_space<vmem>>, vector<8x128xf32>
    tpu.vector_store %arg16[%c0_41, %c0_42], %54 {strides = array<i32>} : memref<8x128xf32, #tpu.memory_space<vmem>>, vector<8x128xf32>,
    return
  }
  func.func @transform_0(%arg0: i32) -> (i32, i32) {
    %c0_i32 = arith.constant 0 : i32
    %c0_i32_0 = arith.constant 0 : i32
    return %arg0, %c0_i32 : i32, i32
  }
  func.func @transform_1(%arg0: i32) -> (i32, i32) {
    %c0_i32 = arith.constant 0 : i32
    %c0_i32_0 = arith.constant 0 : i32
    return %arg0, %c0_i32 : i32, i32
  }
  func.func @transform_2(%arg0: i32) -> (i32, i32) {
    %c0_i32 = arith.constant 0 : i32
    %c0_i32_0 = arith.constant 0 : i32
    %c0_i32_1 = arith.constant 0 : i32
    return %c0_i32, %c0_i32_0 : i32, i32
  }
  func.func @transform_3(%arg0: i32) -> (i32, i32) {
    %c0_i32 = arith.constant 0 : i32
    %c0_i32_0 = arith.constant 0 : i32
    %c0_i32_1 = arith.constant 0 : i32
    return %c0_i32, %c0_i32_0 : i32, i32
  }
  func.func @transform_4(%arg0: i32) -> (i32, i32) {
    %c0_i32 = arith.constant 0 : i32
    %c0_i32_0 = arith.constant 0 : i32
    %c0_i32_1 = arith.constant 0 : i32
    return %c0_i32, %c0_i32_0 : i32, i32
  }
  func.func @transform_5(%arg0: i32) -> (i32, i32) {
    %c0_i32 = arith.constant 0 : i32
    %c0_i32_0 = arith.constant 0 : i32
    %c0_i32_1 = arith.constant 0 : i32
    return %c0_i32, %c0_i32_0 : i32, i32
  }
  func.func @transform_6(%arg0: i32) -> (i32, i32) {
    %c0_i32 = arith.constant 0 : i32
    %c0_i32_0 = arith.constant 0 : i32
    %c0_i32_1 = arith.constant 0 : i32
    return %c0_i32, %c0_i32_0 : i32, i32
  }
  func.func @transform_7(%arg0: i32) -> (i32, i32) {
    %c0_i32 = arith.constant 0 : i32
    %c0_i32_0 = arith.constant 0 : i32
    %c0_i32_1 = arith.constant 0 : i32
    return %c0_i32, %c0_i32_0 : i32, i32
  }
  func.func @transform_8(%arg0: i32) -> (i32, i32) {
    %c0_i32 = arith.constant 0 : i32
    %c0_i32_0 = arith.constant 0 : i32
    %c0_i32_1 = arith.constant 0 : i32
    return %c0_i32, %c0_i32_0 : i32, i32
  }
  func.func @transform_9(%arg0: i32) -> (i32, i32) {
    %c0_i32 = arith.constant 0 : i32
    %c0_i32_0 = arith.constant 0 : i32
    %c0_i32_1 = arith.constant 0 : i32
    return %c0_i32, %c0_i32_0 : i32, i32
  }
  func.func @transform_10(%arg0: i32) -> (i32, i32) {
    %c0_i32 = arith.constant 0 : i32
    %c0_i32_0 = arith.constant 0 : i32
    %c0_i32_1 = arith.constant 0 : i32
    return %c0_i32, %c0_i32_0 : i32, i32
  }
  func.func @transform_11(%arg0: i32) -> (i32, i32) {
    %c0_i32 = arith.constant 0 : i32
    %c0_i32_0 = arith.constant 0 : i32
    %c0_i32_1 = arith.constant 0 : i32
    return %c0_i32, %c0_i32_0 : i32, i32
  }
  func.func @transform_12(%arg0: i32) -> (i32, i32) {
    %c0_i32 = arith.constant 0 : i32
    %c0_i32_0 = arith.constant 0 : i32
    %c0_i32_1 = arith.constant 0 : i32
    return %c0_i32, %c0_i32_0 : i32, i32
  }
  func.func @transform_13(%arg0: i32) -> (i32, i32) {
    %c0_i32 = arith.constant 0 : i32
    %c0_i32_0 = arith.constant 0 : i32
    %c0_i32_1 = arith.constant 0 : i32
    return %c0_i32, %c0_i32_0 : i32, i32
  }
  func.func @transform_14(%arg0: i32) -> (i32, i32) {
    %c0_i32 = arith.constant 0 : i32
    %c0_i32_0 = arith.constant 0 : i32
    return %arg0, %c0_i32 : i32, i32
  }
  func.func @transform_15(%arg0: i32) -> (i32, i32) {
    %c0_i32 = arith.constant 0 : i32
    %c0_i32_0 = arith.constant 0 : i32
    return %arg0, %c0_i32 : i32, i32
  }
}

</mosaic_0001>

<llo_original>
// kernel: vae_forward.1
$region0: #{vae_forward.1}
  #allocation0 [shape = 'u32[]', space=smem, size = 0x4, offset = 0x4, fixed_abs, tag = 'smem constant byte address 0x4 - core index']
  #allocation1 [shape = 'u32[144,128]{1,0:T(1,128)}', space=vmem, size = 0x12000, scoped, tag = 'internal scratch']
  %s0 = inlined_call_operand.hbm [shape: f32[8,32], index: 0, kind: input, shape index: {}]
  %s1 = inlined_call_operand.hbm [shape: f32[8,16], index: 1, kind: input, shape index: {}]
  %s2 = inlined_call_operand.vmem [shape: f32[32,128], index: 2, kind: input, shape index: {}]
  %s3 = inlined_call_operand.vmem [shape: f32[1,128], index: 3, kind: input, shape index: {}]
  %s4 = inlined_call_operand.hbm [shape: f32[128,128], index: 4, kind: input, shape index: {}]
  %s5 = inlined_call_operand.vmem [shape: f32[1,128], index: 5, kind: input, shape index: {}]
  %s6 = inlined_call_operand.hbm [shape: f32[128,128], index: 6, kind: input, shape index: {}]
  %s7 = inlined_call_operand.vmem [shape: f32[1,128], index: 7, kind: input, shape index: {}]
  %s8 = inlined_call_operand.hbm [shape: f32[16,128], index: 8, kind: input, shape index: {}]
  %s9 = inlined_call_operand.vmem [shape: f32[1,128], index: 9, kind: input, shape index: {}]
  %s10 = inlined_call_operand.hbm [shape: f32[128,128], index: 10, kind: input, shape index: {}]
  %s11 = inlined_call_operand.vmem [shape: f32[1,128], index: 11, kind: input, shape index: {}]
  %s12 = inlined_call_operand.hbm [shape: f32[128,128], index: 12, kind: input, shape index: {}]
  %s13 = inlined_call_operand.vmem [shape: f32[1,128], index: 13, kind: input, shape index: {}]
  %s14 = inlined_call_operand.hbm [shape: f32[8,128], index: 14, kind: output, shape index: {0}]
  %s15 = inlined_call_operand.vmem [shape: f32[8,128], index: 15, kind: output, shape index: {1}]
  %16 = xla_tuple %s14, %s15
  %s17 = sld [smem:[#allocation0]]
  $region102: #{vae_forward.1} parent=0
    _
  %s19 = ssub.s32 1, %s17
  %s20 = scalar_select 0, %s19, %s17
  $region1: #{vae_forward.1} parent=0
    #allocation2 [shape = 'u8[4096]{0}', space=vmem, size = 0x1000, scoped, tag = 'input window, operand 0, single buffered']
    #allocation3 [shape = 's32[1]{0}', space=sflag, size = 0x4, scoped, tag = 'scoped memory for vae_forward.1']
    #allocation4 [shape = 's32[1]{0}', space=sflag, size = 0x4, scoped, tag = 'scoped memory for vae_forward.1']
    #allocation5 [shape = 'u8[4096]{0}', space=vmem, size = 0x1000, scoped, tag = 'input window, operand 1, single buffered']
    #allocation6 [shape = 's32[1]{0}', space=sflag, size = 0x4, scoped, tag = 'scoped memory for vae_forward.1']
    #allocation7 [shape = 'u8[65536]{0}', space=vmem, size = 0x10000, scoped, tag = 'input window, operand 4, single buffered']
    #allocation8 [shape = 'u8[65536]{0}', space=vmem, size = 0x10000, scoped, tag = 'input window, operand 6, single buffered']
    #allocation9 [shape = 's32[1]{0}', space=sflag, size = 0x4, scoped, tag = 'scoped memory for vae_forward.1']
    #allocation10 [shape = 'u8[8192]{0}', space=vmem, size = 0x2000, scoped, tag = 'input window, operand 8, single buffered']
    #allocation11 [shape = 'u8[65536]{0}', space=vmem, size = 0x10000, scoped, tag = 'input window, operand 10, single buffered']
    #allocation12 [shape = 's32[1]{0}', space=sflag, size = 0x4, scoped, tag = 'scoped memory for vae_forward.1']
    #allocation13 [shape = 'u8[65536]{0}', space=vmem, size = 0x10000, scoped, tag = 'input window, operand 12, single buffered']
    #allocation14 [shape = 'u8[4096]{0}', space=vmem, size = 0x1000, scoped, tag = 'output window, operand 0, single buffered']
    %21 = vsyncpa [#allocation3], 0
    %22 = vsyncpa [#allocation6], 0
    %23 = vsyncpa [#allocation9], 0
    %24 = vsyncpa [#allocation12], 0
    %25 = vsyncpa [#allocation4], 0
    // Predicated region
    $region2: #{vae_forward.1} parent=1 // pred_check
      _
    $region3: #{vae_forward.1} parent=1 // pred_check_branch
      %27 = sbr.rel (0) target = $region5
    $region4: #{vae_forward.1} parent=1 // pred_region
      %s29 = ssub.s32 128, 128
      %30 = vsyncadd [#allocation3], %s29
      %s32 = sshll.u32 [#allocation2], 4
      %s33 = int_to_ptr.vmem [resolvable:$true] %s32
      %35 = dma.hbm_to_vmem [thread:$0]  %s0, 128, %s33, [#allocation3]
    $region5: #{vae_forward.1} parent=1 // pred_fallthru
      _
    // Predicated region
    $region6: #{vae_forward.1} parent=1 // pred_check
      _
    $region7: #{vae_forward.1} parent=1 // pred_check_branch
      %37 = sbr.rel (0) target = $region9
    $region8: #{vae_forward.1} parent=1 // pred_region
      %s39 = ssub.s32 128, 128
      %40 = vsyncadd [#allocation6], %s39
      %s42 = sshll.u32 [#allocation5], 4
      %s43 = int_to_ptr.vmem [resolvable:$true] %s42
      %45 = dma.hbm_to_vmem [thread:$0]  %s1, 128, %s43, [#allocation6]
    $region9: #{vae_forward.1} parent=1 // pred_fallthru
      _
    // Predicated region
    $region10: #{vae_forward.1} parent=1 // pred_check
      _
    $region11: #{vae_forward.1} parent=1 // pred_check_branch
      %47 = sbr.rel (0) target = $region13
    $region12: #{vae_forward.1} parent=1 // pred_region
      _
    $region13: #{vae_forward.1} parent=1 // pred_fallthru
      _
    // Predicated region
    $region14: #{vae_forward.1} parent=1 // pred_check
      _
    $region15: #{vae_forward.1} parent=1 // pred_check_branch
      %49 = sbr.rel (0) target = $region17
    $region16: #{vae_forward.1} parent=1 // pred_region
      _
    $region17: #{vae_forward.1} parent=1 // pred_fallthru
      _
    // Predicated region
    $region18: #{vae_forward.1} parent=1 // pred_check
      _
    $region19: #{vae_forward.1} parent=1 // pred_check_branch
      %51 = sbr.rel (0) target = $region21
    $region20: #{vae_forward.1} parent=1 // pred_region
      %s53 = ssub.s32 2048, 2048
      %54 = vsyncadd [#allocation6], %s53
      %s55 = sshll.u32 [#allocation7], 4
      %s56 = int_to_ptr.vmem [resolvable:$true] %s55
      %61 = dma.hbm_to_vmem [thread:$0]  %s4, 2048, %s56, [#allocation6], 128, 128, 8
    $region21: #{vae_forward.1} parent=1 // pred_fallthru
      _
    // Predicated region
    $region22: #{vae_forward.1} parent=1 // pred_check
      _
    $region23: #{vae_forward.1} parent=1 // pred_check_branch
      %63 = sbr.rel (0) target = $region25
    $region24: #{vae_forward.1} parent=1 // pred_region
      _
    $region25: #{vae_forward.1} parent=1 // pred_fallthru
      _
    // Predicated region
    $region26: #{vae_forward.1} parent=1 // pred_check
      _
    $region27: #{vae_forward.1} parent=1 // pred_check_branch
      %65 = sbr.rel (0) target = $region29
    $region28: #{vae_forward.1} parent=1 // pred_region
      %s67 = ssub.s32 2048, 2048
      %68 = vsyncadd [#allocation9], %s67
      %s69 = sshll.u32 [#allocation8], 4
      %s70 = int_to_ptr.vmem [resolvable:$true] %s69
      %75 = dma.hbm_to_vmem [thread:$0]  %s6, 2048, %s70, [#allocation9], 128, 128, 8
    $region29: #{vae_forward.1} parent=1 // pred_fallthru
      _
    // Predicated region
    $region30: #{vae_forward.1} parent=1 // pred_check
      _
    $region31: #{vae_forward.1} parent=1 // pred_check_branch
      %77 = sbr.rel (0) target = $region33
    $region32: #{vae_forward.1} parent=1 // pred_region
      _
    $region33: #{vae_forward.1} parent=1 // pred_fallthru
      _
    // Predicated region
    $region34: #{vae_forward.1} parent=1 // pred_check
      _
    $region35: #{vae_forward.1} parent=1 // pred_check_branch
      %79 = sbr.rel (0) target = $region37
    $region36: #{vae_forward.1} parent=1 // pred_region
      %s81 = ssub.s32 256, 256
      %82 = vsyncadd [#allocation9], %s81
      %s83 = sshll.u32 [#allocation10], 4
      %s84 = int_to_ptr.vmem [resolvable:$true] %s83
      %89 = dma.hbm_to_vmem [thread:$0]  %s8, 256, %s84, [#allocation9], 128, 128, 8
    $region37: #{vae_forward.1} parent=1 // pred_fallthru
      _
    // Predicated region
    $region38: #{vae_forward.1} parent=1 // pred_check
      _
    $region39: #{vae_forward.1} parent=1 // pred_check_branch
      %91 = sbr.rel (0) target = $region41
    $region40: #{vae_forward.1} parent=1 // pred_region
      _
    $region41: #{vae_forward.1} parent=1 // pred_fallthru
      _
    // Predicated region
    $region42: #{vae_forward.1} parent=1 // pred_check
      _
    $region43: #{vae_forward.1} parent=1 // pred_check_branch
      %93 = sbr.rel (0) target = $region45
    $region44: #{vae_forward.1} parent=1 // pred_region
      %s95 = ssub.s32 2048, 2048
      %96 = vsyncadd [#allocation12], %s95
      %s97 = sshll.u32 [#allocation11], 4
      %s98 = int_to_ptr.vmem [resolvable:$true] %s97
      %103 = dma.hbm_to_vmem [thread:$0]  %s10, 2048, %s98, [#allocation12], 128, 128, 8
    $region45: #{vae_forward.1} parent=1 // pred_fallthru
      _
    // Predicated region
    $region46: #{vae_forward.1} parent=1 // pred_check
      _
    $region47: #{vae_forward.1} parent=1 // pred_check_branch
      %105 = sbr.rel (0) target = $region49
    $region48: #{vae_forward.1} parent=1 // pred_region
      _
    $region49: #{vae_forward.1} parent=1 // pred_fallthru
      _
    // Predicated region
    $region50: #{vae_forward.1} parent=1 // pred_check
      _
    $region51: #{vae_forward.1} parent=1 // pred_check_branch
      %107 = sbr.rel (0) target = $region53
    $region52: #{vae_forward.1} parent=1 // pred_region
      %s109 = ssub.s32 2048, 2048
      %110 = vsyncadd [#allocation12], %s109
      %s111 = sshll.u32 [#allocation13], 4
      %s112 = int_to_ptr.vmem [resolvable:$true] %s111
      %117 = dma.hbm_to_vmem [thread:$0]  %s12, 2048, %s112, [#allocation12], 128, 128, 8
    $region53: #{vae_forward.1} parent=1 // pred_fallthru
      _
    // Predicated region
    $region54: #{vae_forward.1} parent=1 // pred_check
      _
    $region55: #{vae_forward.1} parent=1 // pred_check_branch
      %119 = sbr.rel (0) target = $region57
    $region56: #{vae_forward.1} parent=1 // pred_region
      _
    $region57: #{vae_forward.1} parent=1 // pred_fallthru
      _
    // Predicated region
    $region58: #{vae_forward.1} parent=1 // pred_check
      _
    $region59: #{vae_forward.1} parent=1 // pred_check_branch
      %121 = sbr.rel (0) target = $region61
    $region60: #{vae_forward.1} parent=1 // pred_region
      %122 = dma.done [#allocation3], 128
    $region61: #{vae_forward.1} parent=1 // pred_fallthru
      _
    // Predicated region
    $region62: #{vae_forward.1} parent=1 // pred_check
      _
    $region63: #{vae_forward.1} parent=1 // pred_check_branch
      %124 = sbr.rel (0) target = $region65
    $region64: #{vae_forward.1} parent=1 // pred_region
      %125 = dma.done [#allocation6], 128
    $region65: #{vae_forward.1} parent=1 // pred_fallthru
      _
    // Predicated region
    $region66: #{vae_forward.1} parent=1 // pred_check
      _
    $region67: #{vae_forward.1} parent=1 // pred_check_branch
      %127 = sbr.rel (0) target = $region69
    $region68: #{vae_forward.1} parent=1 // pred_region
      %128 = dma.done [#allocation6], 2048
    $region69: #{vae_forward.1} parent=1 // pred_fallthru
      _
    // Predicated region
    $region70: #{vae_forward.1} parent=1 // pred_check
      _
    $region71: #{vae_forward.1} parent=1 // pred_check_branch
      %130 = sbr.rel (0) target = $region73
    $region72: #{vae_forward.1} parent=1 // pred_region
      %131 = dma.done [#allocation9], 2048
    $region73: #{vae_forward.1} parent=1 // pred_fallthru
      _
    // Predicated region
    $region74: #{vae_forward.1} parent=1 // pred_check
      _
    $region75: #{vae_forward.1} parent=1 // pred_check_branch
      %133 = sbr.rel (0) target = $region77
    $region76: #{vae_forward.1} parent=1 // pred_region
      %134 = dma.done [#allocation9], 256
    $region77: #{vae_forward.1} parent=1 // pred_fallthru
      _
    // Predicated region
    $region78: #{vae_forward.1} parent=1 // pred_check
      _
    $region79: #{vae_forward.1} parent=1 // pred_check_branch
      %136 = sbr.rel (0) target = $region81
    $region80: #{vae_forward.1} parent=1 // pred_region
      %137 = dma.done [#allocation12], 2048
    $region81: #{vae_forward.1} parent=1 // pred_fallthru
      _
    // Predicated region
    $region82: #{vae_forward.1} parent=1 // pred_check
      _
    $region83: #{vae_forward.1} parent=1 // pred_check_branch
      %139 = sbr.rel (0) target = $region85
    $region84: #{vae_forward.1} parent=1 // pred_region
      %140 = dma.done [#allocation12], 2048
    $region85: #{vae_forward.1} parent=1 // pred_fallthru
      _
    %v141 = vld [vmem:[#allocation2] sm:$0xff]
    %v142 = vld [vmem:[%s2] sm:$0xff]
    %v143 = vld [vmem:[%s2 + $0x8] sm:$0xff]
    %v144 = vld [vmem:[%s2 + $0x10] sm:$0xff]
    %v145 = vld [vmem:[%s2 + $0x18] sm:$0xff]
    %v146 = vld [vmem:[%s3] sm:$0x1]
    %v148 = vlaneseq
    %v149 = vshrl.u32 %v148, 7
    %v150 = vsub.s32 0, %v149
    %v151 = vrot.slane %v146, %v150
    %vm153 = vcmask 261120
    %v155 = vsel %vm153, %v141, 0
    %157 = vmatprep.subr.mxu0 0.0
    %158 = vmatpush1.msra.mxu0 %v142
    %159 = vmatprep.subr.mxu0 0.0
    %160 = vmatpush1.msra.mxu0 %v143
    %161 = vmatprep.subr.mxu0 0.0
    %162 = vmatpush1.msra.mxu0 %v144
    %163 = vmatprep.subr.mxu0 0.0
    %164 = vmatpush1.msra.mxu0 %v145
    %165 = vmatprep.subr.mxu0 0.0
    %166 = vmatpush1.msra.mxu0 0.0
    %167 = vmatprep.subr.mxu0 0.0
    %168 = vmatpush1.msra.mxu0 0.0
    %169 = vmatprep.subr.mxu0 0.0
    %170 = vmatpush1.msra.mxu0 0.0
    %171 = vmatprep.subr.mxu0 0.0
    %172 = vmatpush1.msra.mxu0 0.0
    %173 = vmatprep.subr.mxu0 0.0
    %174 = vmatpush1.msra.mxu0 0.0
    %175 = vmatprep.subr.mxu0 0.0
    %176 = vmatpush1.msra.mxu0 0.0
    %177 = vmatprep.subr.mxu0 0.0
    %178 = vmatpush1.msra.mxu0 0.0
    %179 = vmatprep.subr.mxu0 0.0
    %180 = vmatpush1.msra.mxu0 0.0
    %181 = vmatprep.subr.mxu0 0.0
    %182 = vmatpush1.msra.mxu0 0.0
    %183 = vmatprep.subr.mxu0 0.0
    %184 = vmatpush1.msra.mxu0 0.0
    %185 = vmatprep.subr.mxu0 0.0
    %186 = vmatpush1.msra.mxu0 0.0
    %187 = vmatprep.subr.mxu0 0.0
    %188 = vmatpush1.msra.mxu0 0.0
    %189 = vmatprep.subr.mxu0 0.0
    %190 = vmatpush1.msra.mxu0 0.0
    %191 = vmatprep.subr.mxu0 0.0
    %192 = vmatpush1.msra.mxu0 0.0
    %193 = vmatprep.subr.mxu0 0.0
    %194 = vmatpush1.msra.mxu0 0.0
    %195 = vmatprep.subr.mxu0 0.0
    %196 = vmatpush1.msra.mxu0 0.0
    %197 = vmatprep.subr.mxu0 0.0
    %198 = vmatpush1.msra.mxu0 0.0
    %199 = vmatprep.subr.mxu0 0.0
    %200 = vmatpush1.msra.mxu0 0.0
    %201 = vmatprep.subr.mxu0 0.0
    %202 = vmatpush1.msra.mxu0 0.0
    %203 = vmatprep.subr.mxu0 0.0
    %204 = vmatpush1.msra.mxu0 0.0
    %205 = vmatprep.subr.mxu0 0.0
    %206 = vmatpush1.msra.mxu0 0.0
    %207 = vmatprep.subr.mxu0 0.0
    %208 = vmatpush1.msra.mxu0 0.0
    %209 = vmatprep.subr.mxu0 0.0
    %210 = vmatpush1.msra.mxu0 0.0
    %211 = vmatprep.subr.mxu0 0.0
    %212 = vmatpush1.msra.mxu0 0.0
    %213 = vmatprep.subr.mxu0 0.0
    %214 = vmatpush1.msra.mxu0 0.0
    %215 = vmatprep.subr.mxu0 0.0
    %216 = vmatpush1.msra.mxu0 0.0
    %217 = vmatprep.subr.mxu0 0.0
    %218 = vmatpush1.msra.mxu0 0.0
    %219 = vmatprep.subr.mxu0 0.0
    %220 = vmatpush1.msra.mxu0 0.0
    %221 = vmatprep.mubr.f32.mxu0 0.0
    %222 = vmatmul.mubr.f32.gmra.mrb[0].mxu0 %v155
    %v223 = vpop.f32.mrb[0].mxu0
    %v224 = vadd.f32 %v151, %v223
    %v225 = vpop.f32.mrb[0].mxu0
    %226 = vdwg.mxu0
    %v227 = vmax.f32 %v224, 0.0
    %v228 = vld [vmem:[#allocation7] sm:$0xff]
    %v229 = vld [vmem:[#allocation7 + $0x8] sm:$0xff]
    %v230 = vld [vmem:[#allocation7 + $0x10] sm:$0xff]
    %v231 = vld [vmem:[#allocation7 + $0x18] sm:$0xff]
    %v232 = vld [vmem:[#allocation7 + $0x20] sm:$0xff]
    %v233 = vld [vmem:[#allocation7 + $0x28] sm:$0xff]
    %v234 = vld [vmem:[#allocation7 + $0x30] sm:$0xff]
    %v235 = vld [vmem:[#allocation7 + $0x38] sm:$0xff]
    %v236 = vld [vmem:[#allocation7 + $0x40] sm:$0xff]
    %v237 = vld [vmem:[#allocation7 + $0x48] sm:$0xff]
    %v238 = vld [vmem:[#allocation7 + $0x50] sm:$0xff]
    %v239 = vld [vmem:[#allocation7 + $0x58] sm:$0xff]
    %v240 = vld [vmem:[#allocation7 + $0x60] sm:$0xff]
    %v241 = vld [vmem:[#allocation7 + $0x68] sm:$0xff]
    %v242 = vld [vmem:[#allocation7 + $0x70] sm:$0xff]
    %v243 = vld [vmem:[#allocation7 + $0x78] sm:$0xff]
    %v244 = vld [vmem:[%s5] sm:$0x1]
    %v246 = vlaneseq
    %v247 = vshrl.u32 %v246, 7
    %v248 = vsub.s32 0, %v247
    %v249 = vrot.slane %v244, %v248
    %251 = vmatprep.subr.mxu0 0.0
    %252 = vmatpush1.msra.mxu0 %v228
    %253 = vmatprep.subr.mxu0 0.0
    %254 = vmatpush1.msra.mxu0 %v229
    %255 = vmatprep.subr.mxu0 0.0
    %256 = vmatpush1.msra.mxu0 %v230
    %257 = vmatprep.subr.mxu0 0.0
    %258 = vmatpush1.msra.mxu0 %v231
    %259 = vmatprep.subr.mxu0 0.0
    %260 = vmatpush1.msra.mxu0 %v232
    %261 = vmatprep.subr.mxu0 0.0
    %262 = vmatpush1.msra.mxu0 %v233
    %263 = vmatprep.subr.mxu0 0.0
    %264 = vmatpush1.msra.mxu0 %v234
    %265 = vmatprep.subr.mxu0 0.0
    %266 = vmatpush1.msra.mxu0 %v235
    %267 = vmatprep.subr.mxu0 0.0
    %268 = vmatpush1.msra.mxu0 %v236
    %269 = vmatprep.subr.mxu0 0.0
    %270 = vmatpush1.msra.mxu0 %v237
    %271 = vmatprep.subr.mxu0 0.0
    %272 = vmatpush1.msra.mxu0 %v238
    %273 = vmatprep.subr.mxu0 0.0
    %274 = vmatpush1.msra.mxu0 %v239
    %275 = vmatprep.subr.mxu0 0.0
    %276 = vmatpush1.msra.mxu0 %v240
    %277 = vmatprep.subr.mxu0 0.0
    %278 = vmatpush1.msra.mxu0 %v241
    %279 = vmatprep.subr.mxu0 0.0
    %280 = vmatpush1.msra.mxu0 %v242
    %281 = vmatprep.subr.mxu0 0.0
    %282 = vmatpush1.msra.mxu0 %v243
    %283 = vmatprep.subr.mxu0 0.0
    %284 = vmatpush1.msra.mxu0 0.0
    %285 = vmatprep.subr.mxu0 0.0
    %286 = vmatpush1.msra.mxu0 0.0
    %287 = vmatprep.subr.mxu0 0.0
    %288 = vmatpush1.msra.mxu0 0.0
    %289 = vmatprep.subr.mxu0 0.0
    %290 = vmatpush1.msra.mxu0 0.0
    %291 = vmatprep.subr.mxu0 0.0
    %292 = vmatpush1.msra.mxu0 0.0
    %293 = vmatprep.subr.mxu0 0.0
    %294 = vmatpush1.msra.mxu0 0.0
    %295 = vmatprep.subr.mxu0 0.0
    %296 = vmatpush1.msra.mxu0 0.0
    %297 = vmatprep.subr.mxu0 0.0
    %298 = vmatpush1.msra.mxu0 0.0
    %299 = vmatprep.subr.mxu0 0.0
    %300 = vmatpush1.msra.mxu0 0.0
    %301 = vmatprep.subr.mxu0 0.0
    %302 = vmatpush1.msra.mxu0 0.0
    %303 = vmatprep.subr.mxu0 0.0
    %304 = vmatpush1.msra.mxu0 0.0
    %305 = vmatprep.subr.mxu0 0.0
    %306 = vmatpush1.msra.mxu0 0.0
    %307 = vmatprep.subr.mxu0 0.0
    %308 = vmatpush1.msra.mxu0 0.0
    %309 = vmatprep.subr.mxu0 0.0
    %310 = vmatpush1.msra.mxu0 0.0
    %311 = vmatprep.subr.mxu0 0.0
    %312 = vmatpush1.msra.mxu0 0.0
    %313 = vmatprep.subr.mxu0 0.0
    %314 = vmatpush1.msra.mxu0 0.0
    %315 = vmatprep.mubr.f32.mxu0 0.0
    %316 = vmatmul.mubr.f32.gmra.mrb[0].mxu0 %v227
    %v317 = vpop.f32.mrb[0].mxu0
    %v318 = vadd.f32 %v249, %v317
    %v319 = vpop.f32.mrb[0].mxu0
    %320 = vdwg.mxu0
    %v321 = vmax.f32 %v318, 0.0
    %v322 = vld [vmem:[#allocation8] sm:$0xff]
    %v323 = vld [vmem:[#allocation8 + $0x8] sm:$0xff]
    %v324 = vld [vmem:[#allocation8 + $0x10] sm:$0xff]
    %v325 = vld [vmem:[#allocation8 + $0x18] sm:$0xff]
    %v326 = vld [vmem:[#allocation8 + $0x20] sm:$0xff]
    %v327 = vld [vmem:[#allocation8 + $0x28] sm:$0xff]
    %v328 = vld [vmem:[#allocation8 + $0x30] sm:$0xff]
    %v329 = vld [vmem:[#allocation8 + $0x38] sm:$0xff]
    %v330 = vld [vmem:[#allocation8 + $0x40] sm:$0xff]
    %v331 = vld [vmem:[#allocation8 + $0x48] sm:$0xff]
    %v332 = vld [vmem:[#allocation8 + $0x50] sm:$0xff]
    %v333 = vld [vmem:[#allocation8 + $0x58] sm:$0xff]
    %v334 = vld [vmem:[#allocation8 + $0x60] sm:$0xff]
    %v335 = vld [vmem:[#allocation8 + $0x68] sm:$0xff]
    %v336 = vld [vmem:[#allocation8 + $0x70] sm:$0xff]
    %v337 = vld [vmem:[#allocation8 + $0x78] sm:$0xff]
    %v338 = vld [vmem:[%s7] sm:$0x1]
    %v340 = vlaneseq
    %v341 = vshrl.u32 %v340, 7
    %v342 = vsub.s32 0, %v341
    %v343 = vrot.slane %v338, %v342
    %345 = vmatprep.subr.mxu0 0.0
    %346 = vmatpush1.msra.mxu0 %v322
    %347 = vmatprep.subr.mxu0 0.0
    %348 = vmatpush1.msra.mxu0 %v323
    %349 = vmatprep.subr.mxu0 0.0
    %350 = vmatpush1.msra.mxu0 %v324
    %351 = vmatprep.subr.mxu0 0.0
    %352 = vmatpush1.msra.mxu0 %v325
    %353 = vmatprep.subr.mxu0 0.0
    %354 = vmatpush1.msra.mxu0 %v326
    %355 = vmatprep.subr.mxu0 0.0
    %356 = vmatpush1.msra.mxu0 %v327
    %357 = vmatprep.subr.mxu0 0.0
    %358 = vmatpush1.msra.mxu0 %v328
    %359 = vmatprep.subr.mxu0 0.0
    %360 = vmatpush1.msra.mxu0 %v329
    %361 = vmatprep.subr.mxu0 0.0
    %362 = vmatpush1.msra.mxu0 %v330
    %363 = vmatprep.subr.mxu0 0.0
    %364 = vmatpush1.msra.mxu0 %v331
    %365 = vmatprep.subr.mxu0 0.0
    %366 = vmatpush1.msra.mxu0 %v332
    %367 = vmatprep.subr.mxu0 0.0
    %368 = vmatpush1.msra.mxu0 %v333
    %369 = vmatprep.subr.mxu0 0.0
    %370 = vmatpush1.msra.mxu0 %v334
    %371 = vmatprep.subr.mxu0 0.0
    %372 = vmatpush1.msra.mxu0 %v335
    %373 = vmatprep.subr.mxu0 0.0
    %374 = vmatpush1.msra.mxu0 %v336
    %375 = vmatprep.subr.mxu0 0.0
    %376 = vmatpush1.msra.mxu0 %v337
    %377 = vmatprep.subr.mxu0 0.0
    %378 = vmatpush1.msra.mxu0 0.0
    %379 = vmatprep.subr.mxu0 0.0
    %380 = vmatpush1.msra.mxu0 0.0
    %381 = vmatprep.subr.mxu0 0.0
    %382 = vmatpush1.msra.mxu0 0.0
    %383 = vmatprep.subr.mxu0 0.0
    %384 = vmatpush1.msra.mxu0 0.0
    %385 = vmatprep.subr.mxu0 0.0
    %386 = vmatpush1.msra.mxu0 0.0
    %387 = vmatprep.subr.mxu0 0.0
    %388 = vmatpush1.msra.mxu0 0.0
    %389 = vmatprep.subr.mxu0 0.0
    %390 = vmatpush1.msra.mxu0 0.0
    %391 = vmatprep.subr.mxu0 0.0
    %392 = vmatpush1.msra.mxu0 0.0
    %393 = vmatprep.subr.mxu0 0.0
    %394 = vmatpush1.msra.mxu0 0.0
    %395 = vmatprep.subr.mxu0 0.0
    %396 = vmatpush1.msra.mxu0 0.0
    %397 = vmatprep.subr.mxu0 0.0
    %398 = vmatpush1.msra.mxu0 0.0
    %399 = vmatprep.subr.mxu0 0.0
    %400 = vmatpush1.msra.mxu0 0.0
    %401 = vmatprep.subr.mxu0 0.0
    %402 = vmatpush1.msra.mxu0 0.0
    %403 = vmatprep.subr.mxu0 0.0
    %404 = vmatpush1.msra.mxu0 0.0
    %405 = vmatprep.subr.mxu0 0.0
    %406 = vmatpush1.msra.mxu0 0.0
    %407 = vmatprep.subr.mxu0 0.0
    %408 = vmatpush1.msra.mxu0 0.0
    %409 = vmatprep.mubr.f32.mxu0 0.0
    %410 = vmatmul.mubr.f32.gmra.mrb[0].mxu0 %v321
    %v411 = vpop.f32.mrb[0].mxu0
    %v412 = vadd.f32 %v343, %v411
    %v413 = vpop.f32.mrb[0].mxu0
    %414 = vdwg.mxu0
    %v415 = vmul.f32 %v412, 0.5
    %v416 = vmul.f32 %v415, 1.442695
    %v417 = vpow.pop %v416
    %v418 = vld [vmem:[#allocation5] sm:$0xff]
    %420 = vrot.lane.b32.xlu0 %v418, 16
    %v421 = vpop.permute.xlu0 %420
    %v423 = vmul.f32 %v417, %v421
    %425 = vrot.lane.b32.xlu0 %v423, 112
    %v426 = vpop.permute.xlu0 %425
    %v428 = vadd.f32 %v412, %v426
    %v429 = vld [vmem:[#allocation10] sm:$0xff]
    %v430 = vld [vmem:[#allocation10 + $0x8] sm:$0xff]
    %v431 = vld [vmem:[%s9] sm:$0x1]
    %v433 = vlaneseq
    %v434 = vshrl.u32 %v433, 7
    %v435 = vsub.s32 0, %v434
    %v436 = vrot.slane %v431, %v435
    %vm438 = vcmask 130048
    %v440 = vsel %vm438, %v428, 0
    %442 = vmatprep.subr.mxu0 0.0
    %443 = vmatpush1.msra.mxu0 %v429
    %444 = vmatprep.subr.mxu0 0.0
    %445 = vmatpush1.msra.mxu0 %v430
    %446 = vmatprep.subr.mxu0 0.0
    %447 = vmatpush1.msra.mxu0 0.0
    %448 = vmatprep.subr.mxu0 0.0
    %449 = vmatpush1.msra.mxu0 0.0
    %450 = vmatprep.subr.mxu0 0.0
    %451 = vmatpush1.msra.mxu0 0.0
    %452 = vmatprep.subr.mxu0 0.0
    %453 = vmatpush1.msra.mxu0 0.0
    %454 = vmatprep.subr.mxu0 0.0
    %455 = vmatpush1.msra.mxu0 0.0
    %456 = vmatprep.subr.mxu0 0.0
    %457 = vmatpush1.msra.mxu0 0.0
    %458 = vmatprep.subr.mxu0 0.0
    %459 = vmatpush1.msra.mxu0 0.0
    %460 = vmatprep.subr.mxu0 0.0
    %461 = vmatpush1.msra.mxu0 0.0
    %462 = vmatprep.subr.mxu0 0.0
    %463 = vmatpush1.msra.mxu0 0.0
    %464 = vmatprep.subr.mxu0 0.0
    %465 = vmatpush1.msra.mxu0 0.0
    %466 = vmatprep.subr.mxu0 0.0
    %467 = vmatpush1.msra.mxu0 0.0
    %468 = vmatprep.subr.mxu0 0.0
    %469 = vmatpush1.msra.mxu0 0.0
    %470 = vmatprep.subr.mxu0 0.0
    %471 = vmatpush1.msra.mxu0 0.0
    %472 = vmatprep.subr.mxu0 0.0
    %473 = vmatpush1.msra.mxu0 0.0
    %474 = vmatprep.subr.mxu0 0.0
    %475 = vmatpush1.msra.mxu0 0.0
    %476 = vmatprep.subr.mxu0 0.0
    %477 = vmatpush1.msra.mxu0 0.0
    %478 = vmatprep.subr.mxu0 0.0
    %479 = vmatpush1.msra.mxu0 0.0
    %480 = vmatprep.subr.mxu0 0.0
    %481 = vmatpush1.msra.mxu0 0.0
    %482 = vmatprep.subr.mxu0 0.0
    %483 = vmatpush1.msra.mxu0 0.0
    %484 = vmatprep.subr.mxu0 0.0
    %485 = vmatpush1.msra.mxu0 0.0
    %486 = vmatprep.subr.mxu0 0.0
    %487 = vmatpush1.msra.mxu0 0.0
    %488 = vmatprep.subr.mxu0 0.0
    %489 = vmatpush1.msra.mxu0 0.0
    %490 = vmatprep.subr.mxu0 0.0
    %491 = vmatpush1.msra.mxu0 0.0
    %492 = vmatprep.subr.mxu0 0.0
    %493 = vmatpush1.msra.mxu0 0.0
    %494 = vmatprep.subr.mxu0 0.0
    %495 = vmatpush1.msra.mxu0 0.0
    %496 = vmatprep.subr.mxu0 0.0
    %497 = vmatpush1.msra.mxu0 0.0
    %498 = vmatprep.subr.mxu0 0.0
    %499 = vmatpush1.msra.mxu0 0.0
    %500 = vmatprep.subr.mxu0 0.0
    %501 = vmatpush1.msra.mxu0 0.0
    %502 = vmatprep.subr.mxu0 0.0
    %503 = vmatpush1.msra.mxu0 0.0
    %504 = vmatprep.subr.mxu0 0.0
    %505 = vmatpush1.msra.mxu0 0.0
    %506 = vmatprep.mubr.f32.mxu0 0.0
    %507 = vmatmul.mubr.f32.gmra.mrb[0].mxu0 %v440
    %v508 = vpop.f32.mrb[0].mxu0
    %v509 = vadd.f32 %v436, %v508
    %v510 = vpop.f32.mrb[0].mxu0
    %511 = vdwg.mxu0
    %v512 = vmax.f32 %v509, 0.0
    %v513 = vld [vmem:[#allocation11] sm:$0xff]
    %v514 = vld [vmem:[#allocation11 + $0x8] sm:$0xff]
    %v515 = vld [vmem:[#allocation11 + $0x10] sm:$0xff]
    %v516 = vld [vmem:[#allocation11 + $0x18] sm:$0xff]
    %v517 = vld [vmem:[#allocation11 + $0x20] sm:$0xff]
    %v518 = vld [vmem:[#allocation11 + $0x28] sm:$0xff]
    %v519 = vld [vmem:[#allocation11 + $0x30] sm:$0xff]
    %v520 = vld [vmem:[#allocation11 + $0x38] sm:$0xff]
    %v521 = vld [vmem:[#allocation11 + $0x40] sm:$0xff]
    %v522 = vld [vmem:[#allocation11 + $0x48] sm:$0xff]
    %v523 = vld [vmem:[#allocation11 + $0x50] sm:$0xff]
    %v524 = vld [vmem:[#allocation11 + $0x58] sm:$0xff]
    %v525 = vld [vmem:[#allocation11 + $0x60] sm:$0xff]
    %v526 = vld [vmem:[#allocation11 + $0x68] sm:$0xff]
    %v527 = vld [vmem:[#allocation11 + $0x70] sm:$0xff]
    %v528 = vld [vmem:[#allocation11 + $0x78] sm:$0xff]
    %v529 = vld [vmem:[%s11] sm:$0x1]
    %v531 = vlaneseq
    %v532 = vshrl.u32 %v531, 7
    %v533 = vsub.s32 0, %v532
    %v534 = vrot.slane %v529, %v533
    %536 = vmatprep.subr.mxu0 0.0
    %537 = vmatpush1.msra.mxu0 %v513
    %538 = vmatprep.subr.mxu0 0.0
    %539 = vmatpush1.msra.mxu0 %v514
    %540 = vmatprep.subr.mxu0 0.0
    %541 = vmatpush1.msra.mxu0 %v515
    %542 = vmatprep.subr.mxu0 0.0
    %543 = vmatpush1.msra.mxu0 %v516
    %544 = vmatprep.subr.mxu0 0.0
    %545 = vmatpush1.msra.mxu0 %v517
    %546 = vmatprep.subr.mxu0 0.0
    %547 = vmatpush1.msra.mxu0 %v518
    %548 = vmatprep.subr.mxu0 0.0
    %549 = vmatpush1.msra.mxu0 %v519
    %550 = vmatprep.subr.mxu0 0.0
    %551 = vmatpush1.msra.mxu0 %v520
    %552 = vmatprep.subr.mxu0 0.0
    %553 = vmatpush1.msra.mxu0 %v521
    %554 = vmatprep.subr.mxu0 0.0
    %555 = vmatpush1.msra.mxu0 %v522
    %556 = vmatprep.subr.mxu0 0.0
    %557 = vmatpush1.msra.mxu0 %v523
    %558 = vmatprep.subr.mxu0 0.0
    %559 = vmatpush1.msra.mxu0 %v524
    %560 = vmatprep.subr.mxu0 0.0
    %561 = vmatpush1.msra.mxu0 %v525
    %562 = vmatprep.subr.mxu0 0.0
    %563 = vmatpush1.msra.mxu0 %v526
    %564 = vmatprep.subr.mxu0 0.0
    %565 = vmatpush1.msra.mxu0 %v527
    %566 = vmatprep.subr.mxu0 0.0
    %567 = vmatpush1.msra.mxu0 %v528
    %568 = vmatprep.subr.mxu0 0.0
    %569 = vmatpush1.msra.mxu0 0.0
    %570 = vmatprep.subr.mxu0 0.0
    %571 = vmatpush1.msra.mxu0 0.0
    %572 = vmatprep.subr.mxu0 0.0
    %573 = vmatpush1.msra.mxu0 0.0
    %574 = vmatprep.subr.mxu0 0.0
    %575 = vmatpush1.msra.mxu0 0.0
    %576 = vmatprep.subr.mxu0 0.0
    %577 = vmatpush1.msra.mxu0 0.0
    %578 = vmatprep.subr.mxu0 0.0
    %579 = vmatpush1.msra.mxu0 0.0
    %580 = vmatprep.subr.mxu0 0.0
    %581 = vmatpush1.msra.mxu0 0.0
    %582 = vmatprep.subr.mxu0 0.0
    %583 = vmatpush1.msra.mxu0 0.0
    %584 = vmatprep.subr.mxu0 0.0
    %585 = vmatpush1.msra.mxu0 0.0
    %586 = vmatprep.subr.mxu0 0.0
    %587 = vmatpush1.msra.mxu0 0.0
    %588 = vmatprep.subr.mxu0 0.0
    %589 = vmatpush1.msra.mxu0 0.0
    %590 = vmatprep.subr.mxu0 0.0
    %591 = vmatpush1.msra.mxu0 0.0
    %592 = vmatprep.subr.mxu0 0.0
    %593 = vmatpush1.msra.mxu0 0.0
    %594 = vmatprep.subr.mxu0 0.0
    %595 = vmatpush1.msra.mxu0 0.0
    %596 = vmatprep.subr.mxu0 0.0
    %597 = vmatpush1.msra.mxu0 0.0
    %598 = vmatprep.subr.mxu0 0.0
    %599 = vmatpush1.msra.mxu0 0.0
    %600 = vmatprep.mubr.f32.mxu0 0.0
    %601 = vmatmul.mubr.f32.gmra.mrb[0].mxu0 %v512
    %v602 = vpop.f32.mrb[0].mxu0
    %v603 = vadd.f32 %v534, %v602
    %v604 = vpop.f32.mrb[0].mxu0
    %605 = vdwg.mxu0
    %v606 = vmax.f32 %v603, 0.0
    %v607 = vld [vmem:[#allocation13] sm:$0xff]
    %v608 = vld [vmem:[#allocation13 + $0x8] sm:$0xff]
    %v609 = vld [vmem:[#allocation13 + $0x10] sm:$0xff]
    %v610 = vld [vmem:[#allocation13 + $0x18] sm:$0xff]
    %v611 = vld [vmem:[#allocation13 + $0x20] sm:$0xff]
    %v612 = vld [vmem:[#allocation13 + $0x28] sm:$0xff]
    %v613 = vld [vmem:[#allocation13 + $0x30] sm:$0xff]
    %v614 = vld [vmem:[#allocation13 + $0x38] sm:$0xff]
    %v615 = vld [vmem:[#allocation13 + $0x40] sm:$0xff]
    %v616 = vld [vmem:[#allocation13 + $0x48] sm:$0xff]
    %v617 = vld [vmem:[#allocation13 + $0x50] sm:$0xff]
    %v618 = vld [vmem:[#allocation13 + $0x58] sm:$0xff]
    %v619 = vld [vmem:[#allocation13 + $0x60] sm:$0xff]
    %v620 = vld [vmem:[#allocation13 + $0x68] sm:$0xff]
    %v621 = vld [vmem:[#allocation13 + $0x70] sm:$0xff]
    %v622 = vld [vmem:[#allocation13 + $0x78] sm:$0xff]
    %v623 = vld [vmem:[%s13] sm:$0x1]
    %v625 = vlaneseq
    %v626 = vshrl.u32 %v625, 7
    %v627 = vsub.s32 0, %v626
    %v628 = vrot.slane %v623, %v627
    %630 = vmatprep.subr.mxu0 0.0
    %631 = vmatpush1.msra.mxu0 %v607
    %632 = vmatprep.subr.mxu0 0.0
    %633 = vmatpush1.msra.mxu0 %v608
    %634 = vmatprep.subr.mxu0 0.0
    %635 = vmatpush1.msra.mxu0 %v609
    %636 = vmatprep.subr.mxu0 0.0
    %637 = vmatpush1.msra.mxu0 %v610
    %638 = vmatprep.subr.mxu0 0.0
    %639 = vmatpush1.msra.mxu0 %v611
    %640 = vmatprep.subr.mxu0 0.0
    %641 = vmatpush1.msra.mxu0 %v612
    %642 = vmatprep.subr.mxu0 0.0
    %643 = vmatpush1.msra.mxu0 %v613
    %644 = vmatprep.subr.mxu0 0.0
    %645 = vmatpush1.msra.mxu0 %v614
    %646 = vmatprep.subr.mxu0 0.0
    %647 = vmatpush1.msra.mxu0 %v615
    %648 = vmatprep.subr.mxu0 0.0
    %649 = vmatpush1.msra.mxu0 %v616
    %650 = vmatprep.subr.mxu0 0.0
    %651 = vmatpush1.msra.mxu0 %v617
    %652 = vmatprep.subr.mxu0 0.0
    %653 = vmatpush1.msra.mxu0 %v618
    %654 = vmatprep.subr.mxu0 0.0
    %655 = vmatpush1.msra.mxu0 %v619
    %656 = vmatprep.subr.mxu0 0.0
    %657 = vmatpush1.msra.mxu0 %v620
    %658 = vmatprep.subr.mxu0 0.0
    %659 = vmatpush1.msra.mxu0 %v621
    %660 = vmatprep.subr.mxu0 0.0
    %661 = vmatpush1.msra.mxu0 %v622
    %662 = vmatprep.subr.mxu0 0.0
    %663 = vmatpush1.msra.mxu0 0.0
    %664 = vmatprep.subr.mxu0 0.0
    %665 = vmatpush1.msra.mxu0 0.0
    %666 = vmatprep.subr.mxu0 0.0
    %667 = vmatpush1.msra.mxu0 0.0
    %668 = vmatprep.subr.mxu0 0.0
    %669 = vmatpush1.msra.mxu0 0.0
    %670 = vmatprep.subr.mxu0 0.0
    %671 = vmatpush1.msra.mxu0 0.0
    %672 = vmatprep.subr.mxu0 0.0
    %673 = vmatpush1.msra.mxu0 0.0
    %674 = vmatprep.subr.mxu0 0.0
    %675 = vmatpush1.msra.mxu0 0.0
    %676 = vmatprep.subr.mxu0 0.0
    %677 = vmatpush1.msra.mxu0 0.0
    %678 = vmatprep.subr.mxu0 0.0
    %679 = vmatpush1.msra.mxu0 0.0
    %680 = vmatprep.subr.mxu0 0.0
    %681 = vmatpush1.msra.mxu0 0.0
    %682 = vmatprep.subr.mxu0 0.0
    %683 = vmatpush1.msra.mxu0 0.0
    %684 = vmatprep.subr.mxu0 0.0
    %685 = vmatpush1.msra.mxu0 0.0
    %686 = vmatprep.subr.mxu0 0.0
    %687 = vmatpush1.msra.mxu0 0.0
    %688 = vmatprep.subr.mxu0 0.0
    %689 = vmatpush1.msra.mxu0 0.0
    %690 = vmatprep.subr.mxu0 0.0
    %691 = vmatpush1.msra.mxu0 0.0
    %692 = vmatprep.subr.mxu0 0.0
    %693 = vmatpush1.msra.mxu0 0.0
    %694 = vmatprep.mubr.f32.mxu0 0.0
    %695 = vmatmul.mubr.f32.gmra.mrb[0].mxu0 %v606
    %v696 = vpop.f32.mrb[0].mxu0
    %v697 = vadd.f32 %v628, %v696
    %v698 = vpop.f32.mrb[0].mxu0
    %699 = vdwg.mxu0
    %v700 = vxor.u32 %v697, 2147483648
    %v701 = vmul.f32 %v700, 1.442695
    %v702 = vpow.pop %v701
    %v703 = vadd.f32 %v702, 1.0
    %v704 = vrcp.pop %v703
    %v705 = vmul.f32 1.0, %v704
    %706 = vst [vmem:[#allocation14] sm:$0xff] %v705
    %708 = vrot.lane.b32.xlu0 %v412, 16
    %v709 = vpop.permute.xlu0 %708
    %v711 = vsel %vm438, %v428, %v709
    %v712 = vsel %vm153, %v711, %v709
    %vm713 = vcmask 392192
    %v714 = vsel %vm713, %v712, 0.0
    %715 = vst [vmem:[%s15] sm:$0xff] %v714
    // Predicated region
    $region86: #{vae_forward.1} parent=1 // pred_check
      _
    $region87: #{vae_forward.1} parent=1 // pred_check_branch
      %717 = sbr.rel (0) target = $region89
    $region88: #{vae_forward.1} parent=1 // pred_region
      %s719 = ssub.s32 128, 128
      %720 = vsyncadd [#allocation4], %s719
      %s722 = sshll.u32 [#allocation14], 4
      %s723 = int_to_ptr.vmem [resolvable:$true] %s722
      %725 = dma.vmem_to_hbm [thread:$0]  %s723, 128, %s14, [#allocation4]
    $region89: #{vae_forward.1} parent=1 // pred_fallthru
      _
    // Predicated region
    $region90: #{vae_forward.1} parent=1 // pred_check
      _
    $region91: #{vae_forward.1} parent=1 // pred_check_branch
      %727 = sbr.rel (0) target = $region93
    $region92: #{vae_forward.1} parent=1 // pred_region
      _
    $region93: #{vae_forward.1} parent=1 // pred_fallthru
      _
    // Predicated region
    $region94: #{vae_forward.1} parent=1 // pred_check
      _
    $region95: #{vae_forward.1} parent=1 // pred_check_branch
      %729 = sbr.rel (0) target = $region97
    $region96: #{vae_forward.1} parent=1 // pred_region
      %730 = dma.done [#allocation4], 128
    $region97: #{vae_forward.1} parent=1 // pred_fallthru
      _
    // Predicated region
    $region98: #{vae_forward.1} parent=1 // pred_check
      _
    $region99: #{vae_forward.1} parent=1 // pred_check_branch
      %732 = sbr.rel (0) target = $region101
    $region100: #{vae_forward.1} parent=1 // pred_region
      _
    $region101: #{vae_forward.1} parent=1 // pred_fallthru
      _
    %733 = vsyncpa [#allocation3], 1
    %734 = vsyncpa [#allocation6], 1
    %735 = vsyncpa [#allocation9], 1
    %736 = vsyncpa [#allocation12], 1
    %737 = vsyncpa [#allocation4], 1

</llo_original>
